<compile_context>
chip_gen: v7x
topology: tpu7x:2x2x1
jax: 0.10.0
libtpu: 0.0.40
codegen_flags: <defaults>
</compile_context>

<pallas_src>
import math

import jax
import jax.numpy as jnp
from jax.experimental import pallas as pl
from jax.experimental.pallas import tpu as pltpu


def _round_up(x, m):
    return ((x + m - 1) // m) * m


# ----------------------------------------------------------------------------
# Pallas kernel: one (tm, tn) output tile per grid step.
#   out[i, j] = x[i] @ W^T[:, j] + bias[j] + (x[i] @ A^T) @ (scaling * B^T)[:, j]
# Pure MXU work + one f32 add; no scratch, no sequential axis.
# ----------------------------------------------------------------------------
def _lora_linear_kernel(x_ref, wT_ref, aT_ref, bTs_ref, bias_ref, o_ref):
    x = x_ref[...]
    base = jnp.dot(x, wT_ref[...], preferred_element_type=jnp.float32)
    xa = jnp.dot(x, aT_ref[...], preferred_element_type=jnp.float32)
    lora = jnp.dot(xa.astype(bTs_ref.dtype), bTs_ref[...],
                   preferred_element_type=jnp.float32)
    o_ref[...] = (base + lora + bias_ref[...]).astype(o_ref.dtype)


# ----------------------------------------------------------------------------
# Per-generation VMEM budget and tile selection.
# ----------------------------------------------------------------------------
def _vmem_budget_bytes():
    kind = ""
    try:
        kind = jax.devices()[0].device_kind.lower()
    except Exception:
        pass
    if "v7" in kind:
        return 48 * 1024 * 1024      # v7x: 64 MiB physical per TC; leave headroom
    if "v5" in kind or "v6" in kind:
        return 96 * 1024 * 1024      # v5e / v6e: 128 MiB physical
    return 64 * 1024 * 1024          # unknown chip: conservative


def _pick_tn(out_p, cap):
    """Largest multiple of 128 <= cap that divides out_p (out_p is a 128-multiple)."""
    tn = min(max(128, (cap // 128) * 128), out_p)
    while tn > 128 and out_p % tn:
        tn -= 128
    return tn


def _choose_tiles(M, IN, OUT_p, R_p, x_isz, w_isz, o_isz, budget, tn_req):
    """Pick (tm, tn) minimizing total HBM traffic subject to the VMEM budget."""
    tn = _pick_tn(OUT_p, tn_req)
    M_g = _round_up(M, 16)                   # sublane-safe for bf16 and f32

    def footprint(tm, tn_):
        return (2 * tm * IN * x_isz          # x tiles (double-buffered)
                + 2 * IN * tn_ * w_isz       # W^T tiles
                + 2 * IN * R_p * w_isz       # A^T (constant block index)
                + 2 * R_p * tn_ * w_isz      # B^T tiles
                + 2 * tn_ * 4                # bias tiles (f32)
                + 2 * tm * tn_ * o_isz)      # output tiles

    while True:
        cands = {t for t in (1024, 512, 256, 128, 64, 32, 16) if t <= M_g}
        if M_g <= 2048:
            cands.add(M_g)                   # whole-M tile: W^T streamed exactly once
        best = None
        for tm in sorted(cands):
            if footprint(tm, tn) > budget:
                continue
            sweeps = -(-M_g // tm)           # number of W^T re-streams from HBM
            m_pad = sweeps * tm
            traffic = (sweeps * IN * OUT_p * w_isz     # weight traffic
                       + m_pad * IN * x_isz            # activation reads
                       + m_pad * OUT_p * o_isz)        # output writes
            if (best is None or traffic < best[0]
                    or (traffic == best[0] and tm > best[1])):
                best = (traffic, tm)
        if best is not None:
            return best[1], tn
        if tn > 128:
            tn = _pick_tn(OUT_p, tn - 128)
            continue
        # TODO(synk): K(=IN) tiling fallback; proceed with the smallest tiles and let
        # vmem_limit_bytes absorb the overshoot.
        return 16, tn


# ----------------------------------------------------------------------------
# Wrapper: tiling, padding, VMEM budget, cost estimate, pallas_call.
# ----------------------------------------------------------------------------
def lora_linear(x, packed, *, tn=512):
    """x: (M, IN) activations; packed: dict from pack_lora_params. Returns (M, OUT)."""
    M, IN = x.shape
    wT, aT, bTs, bias = packed["wT"], packed["aT"], packed["bTs"], packed["bias"]
    OUT = packed["out_features"]
    OUT_p = wT.shape[1]
    R_p = aT.shape[1]
    assert wT.shape[0] == IN and aT.shape[0] == IN

    out_dtype = x.dtype
    x = x.astype(wT.dtype)                 # bf16 compute path; accumulation stays f32

    budget = _vmem_budget_bytes()
    x_isz = x.dtype.itemsize
    w_isz = wT.dtype.itemsize
    o_isz = jnp.dtype(out_dtype).itemsize
    tm, tn = _choose_tiles(M, IN, OUT_p, R_p, x_isz, w_isz, o_isz, budget, tn)

    M_p = _round_up(M, tm)
    if M_p != M:
        x = jnp.pad(x, ((0, M_p - M), (0, 0)))   # zero rows: numerically exact

    grid = (M_p // tm, OUT_p // tn)
    sweeps = M_p // tm

    flops = 2 * M_p * IN * (OUT_p + R_p) + 2 * M_p * R_p * OUT_p
    bytes_accessed = (sweeps * IN * OUT_p * w_isz     # W^T re-streams
                      + M_p * IN * x_isz              # x reads
                      + M_p * OUT_p * o_isz           # output writes
                      + IN * R_p * w_isz              # A^T (once)
                      + sweeps * R_p * OUT_p * w_isz  # B^T re-streams (tiny)
                      + OUT_p * 4)                    # bias
    cost = pl.CostEstimate(flops=int(flops), transcendentals=0,
                           bytes_accessed=int(bytes_accessed))

    out_p = pl.pallas_call(
        _lora_linear_kernel,
        out_shape=jax.ShapeDtypeStruct((M_p, OUT_p), out_dtype),
        grid_spec=pltpu.PrefetchScalarGridSpec(
            num_scalar_prefetch=0,
            grid=grid,
            in_specs=[
                pl.BlockSpec((tm, IN), lambda i, j: (i, 0)),     # x tile
                pl.BlockSpec((IN, tn), lambda i, j: (0, j)),     # W^T tile
                pl.BlockSpec((IN, R_p), lambda i, j: (0, 0)),    # A^T (small, resident)
                pl.BlockSpec((R_p, tn), lambda i, j: (0, j)),    # scaled B^T tile
                pl.BlockSpec((1, tn), lambda i, j: (0, j)),      # bias tile (f32)
            ],
            out_specs=pl.BlockSpec((tm, tn), lambda i, j: (i, j)),
        ),
        compiler_params=pltpu.CompilerParams(
            dimension_semantics=("parallel", "parallel"),
            vmem_limit_bytes=int(budget),
        ),
        cost_estimate=cost,
    )(x, wT, aT, bTs, bias)

    return out_p[:M, :OUT]


# ----------------------------------------------------------------------------
# Parameter setup mirroring LoRALayer (init + one-time kernel-layout packing).
# ----------------------------------------------------------------------------
def init_lora_layer(key, in_features, out_features, rank, alpha):
    """Mirrors LoRALayer.reset_parameters, except lora_B is small non-zero so the
    low-rank path is actually exercised (PyTorch inits it to zero)."""
    k_w, k_a, k_b, k_bias = jax.random.split(key, 4)
    bound_w = 1.0 / math.sqrt(in_features)   # kaiming_uniform_(a=sqrt(5)) bound
    weight = jax.random.uniform(k_w, (out_features, in_features),
                                jnp.float32, -bound_w, bound_w)
    lora_A = jax.random.uniform(k_a, (rank, in_features),
                                jnp.float32, -bound_w, bound_w)
    lora_B = 0.01 * jax.random.normal(k_b, (out_features, rank), jnp.float32)
    bias = jax.random.uniform(k_bias, (out_features,),
                              jnp.float32, -bound_w, bound_w)
    return dict(weight=weight, bias=bias, lora_A=lora_A, lora_B=lora_B,
                scaling=alpha / rank)


def pack_lora_params(params, *, compute_dtype=jnp.bfloat16, lane=256):
    """One-time layout prep (NOT per call): transpose to row-major matmul operands,
    cast weights to the compute dtype, fold `scaling` into B^T, pad OUT to a
    multiple of the target tn and the LoRA rank to the sublane granule only."""
    weight = params["weight"]          # (OUT, IN)
    lora_A = params["lora_A"]          # (R, IN)
    lora_B = params["lora_B"]          # (OUT, R)
    bias = params["bias"]              # (OUT,)
    scaling = float(params["scaling"])
    OUT, _ = weight.shape
    R = lora_A.shape[0]

    sub = 16 if jnp.dtype(compute_dtype).itemsize == 2 else 8
    OUT_p = _round_up(OUT, lane)
    R_p = _round_up(R, sub)

    wT = jnp.pad(weight.T, ((0, 0), (0, OUT_p - OUT))).astype(compute_dtype)
    aT = jnp.pad(lora_A.T, ((0, 0), (0, R_p - R))).astype(compute_dtype)
    bTs = jnp.pad(lora_B.T * scaling,
                  ((0, R_p - R), (0, OUT_p - OUT))).astype(compute_dtype)
    bias2d = jnp.pad(bias.reshape(1, OUT), ((0, 0), (0, OUT_p - OUT)))  # f32
    return dict(wT=wT, aT=aT, bTs=bTs, bias=bias2d, out_features=OUT)


def lora_layer_forward(packed, x, *, tn=512):
    """Unmerged-path LoRALayer.forward via the Pallas kernel. x: (B, S, IN)."""
    B, S, IN = x.shape
    y2d = lora_linear(x.reshape(B * S, IN), packed, tn=tn)
    return y2d.reshape(B, S, packed["out_features"])


def lora_layer_reference(params, x, compute_dtype=jnp.bfloat16):
    """Pure-JAX reference mirroring the kernel's bf16 operand / f32 accumulation path."""
    hi = jax.lax.Precision.HIGHEST
    q = lambda a: a.astype(compute_dtype).astype(jnp.float32)
    xq = q(x)
    base = jnp.einsum("bsi,oi->bso", xq, q(params["weight"]),
                      precision=hi) + params["bias"]
    xa = q(jnp.einsum("bsi,ri->bsr", xq, q(params["lora_A"]), precision=hi))
    lora = jnp.einsum("bsr,or->bso", xa,
                      q(params["lora_B"] * params["scaling"]), precision=hi)
    return base + lora


if __name__ == "__main__":
    key = jax.random.PRNGKey(0)

    # ---- Test 1: small shapes straight from the module defaults.
    k_x, k_p = jax.random.split(jax.random.fold_in(key, 0))
    batch, seq = 2, 8
    in_features, out_features, rank, alpha = 32, 48, 4, 8.0
    x = jax.random.normal(k_x, (batch, seq, in_features), jnp.float32)
    params = init_lora_layer(k_p, in_features, out_features, rank, alpha)
    packed = pack_lora_params(params)
    y = jax.block_until_ready(lora_layer_forward(packed, x))
    y_ref = lora_layer_reference(params, x)
    assert y.shape == (batch, seq, out_features)
    assert jnp.allclose(y, y_ref, atol=1e-2, rtol=1e-2), "test1 mismatch"

    # ---- Test 2: exercises M padding, OUT padding to the tn multiple and a
    #      multi-column output grid with the whole-M resident tile path.
    k_x, k_p = jax.random.split(jax.random.fold_in(key, 1))
    batch, seq = 3, 25
    in_features, out_features, rank, alpha = 128, 384, 4, 8.0
    x = jax.random.normal(k_x, (batch, seq, in_features), jnp.float32)
    params = init_lora_layer(k_p, in_features, out_features, rank, alpha)
    packed = pack_lora_params(params)
    y = jax.block_until_ready(lora_layer_forward(packed, x))
    y_ref = lora_layer_reference(params, x)
    assert y.shape == (batch, seq, out_features)
    assert jnp.allclose(y, y_ref, atol=1e-2, rtol=1e-2), "test2 mismatch"

    print("KERNEL_OK")
</pallas_src>

<mosaic_0001>
module attributes {stable_mosaic.version = 11 : i64} {
  func.func @_lora_linear_kernel(%arg0: i32, %arg1: i32, %arg2: memref<16x32xbf16, #tpu.memory_space<vmem>>, %arg3: memref<32x256xbf16, #tpu.memory_space<vmem>>, %arg4: memref<32x16xbf16, #tpu.memory_space<vmem>>, %arg5: memref<16x256xbf16, #tpu.memory_space<vmem>>, %arg6: memref<1x256xf32, #tpu.memory_space<vmem>>, %arg7: memref<16x256xf32, #tpu.memory_space<vmem>>) attributes {dimension_semantics = [#tpu.dimension_semantics<parallel>, #tpu.dimension_semantics<parallel>], iteration_bounds = array<i64: 1, 1>, scalar_prefetch = 0 : i64, scratch_operands = 0 : i64, tpu.core_type = #tpu.core_type<tc>, window_params = [{transform_indices = @transform_0, window_bounds = array<i64: 16, 32>}, {transform_indices = @transform_1, window_bounds = array<i64: 32, 256>}, {pipeline_mode = #tpu.pipeline_mode<synchronous>, transform_indices = @transform_2, window_bounds = array<i64: 32, 16>}, {transform_indices = @transform_3, window_bounds = array<i64: 16, 256>}, {transform_indices = @transform_4, window_bounds = array<i64: 1, 256>}, {transform_indices = @transform_5, window_bounds = array<i64: 16, 256>}]} {
    %c0 = arith.constant 0 : index
    %c0_0 = arith.constant 0 : index
    %0 = vector.load %arg2[%c0, %c0_0] : memref<16x32xbf16, #tpu.memory_space<vmem>>, vector<16x32xbf16>
    %c0_1 = arith.constant 0 : index
    %c0_2 = arith.constant 0 : index
    %1 = vector.load %arg3[%c0_1, %c0_2] : memref<32x256xbf16, #tpu.memory_space<vmem>>, vector<32x256xbf16>
    %cst = arith.constant dense<0.000000e+00> : vector<16x256xf32>
    %2 = tpu.matmul %0, %1, %cst {dimension_numbers = #tpu.dot_dimension_numbers<[1], [0], [0], [1], [0, 0, 1, 1], [], []>} : vector<16x32xbf16>, vector<32x256xbf16>, vector<16x256xf32> -> vector<16x256xf32>
    %c0_3 = arith.constant 0 : index
    %c0_4 = arith.constant 0 : index
    %3 = vector.load %arg4[%c0_3, %c0_4] : memref<32x16xbf16, #tpu.memory_space<vmem>>, vector<32x16xbf16>
    %cst_5 = arith.constant dense<0.000000e+00> : vector<16x16xf32>
    %4 = tpu.matmul %0, %3, %cst_5 {dimension_numbers = #tpu.dot_dimension_numbers<[1], [0], [0], [1], [0, 0, 1, 1], [], []>} : vector<16x32xbf16>, vector<32x16xbf16>, vector<16x16xf32> -> vector<16x16xf32>
    %5 = arith.truncf %4 : vector<16x16xf32> to vector<16x16xbf16>
    %c0_6 = arith.constant 0 : index
    %c0_7 = arith.constant 0 : index
    %6 = vector.load %arg5[%c0_6, %c0_7] : memref<16x256xbf16, #tpu.memory_space<vmem>>, vector<16x256xbf16>
    %cst_8 = arith.constant dense<0.000000e+00> : vector<16x256xf32>
    %7 = tpu.matmul %5, %6, %cst_8 {dimension_numbers = #tpu.dot_dimension_numbers<[1], [0], [0], [1], [0, 0, 1, 1], [], []>} : vector<16x16xbf16>, vector<16x256xbf16>, vector<16x256xf32> -> vector<16x256xf32>
    %8 = arith.addf %2, %7 : vector<16x256xf32>
    %c0_9 = arith.constant 0 : index
    %c0_10 = arith.constant 0 : index
    %9 = vector.load %arg6[%c0_9, %c0_10] : memref<1x256xf32, #tpu.memory_space<vmem>>, vector<1x256xf32>
    %10 = vector.broadcast %9 : vector<1x256xf32> to vector<16x256xf32>
    %11 = arith.addf %8, %10 : vector<16x256xf32>
    %c0_11 = arith.constant 0 : index
    %c0_12 = arith.constant 0 : index
    %12 = vector.load %arg7[%c0_11, %c0_12] : memref<16x256xf32, #tpu.memory_space<vmem>>, vector<16x256xf32>
    tpu.vector_store %arg7[%c0_11, %c0_12], %11 {strides = array<i32>} : memref<16x256xf32, #tpu.memory_space<vmem>>, vector<16x256xf32>,
    return
  }
  func.func @transform_0(%arg0: i32, %arg1: i32) -> (i32, i32) {
    %c0_i32 = arith.constant 0 : i32
    %c0_i32_0 = arith.constant 0 : i32
    return %arg0, %c0_i32 : i32, i32
  }
  func.func @transform_1(%arg0: i32, %arg1: i32) -> (i32, i32) {
    %c0_i32 = arith.constant 0 : i32
    %c0_i32_0 = arith.constant 0 : i32
    return %c0_i32, %arg1 : i32, i32
  }
  func.func @transform_2(%arg0: i32, %arg1: i32) -> (i32, i32) {
    %c0_i32 = arith.constant 0 : i32
    %c0_i32_0 = arith.constant 0 : i32
    %c0_i32_1 = arith.constant 0 : i32
    return %c0_i32, %c0_i32_0 : i32, i32
  }
  func.func @transform_3(%arg0: i32, %arg1: i32) -> (i32, i32) {
    %c0_i32 = arith.constant 0 : i32
    %c0_i32_0 = arith.constant 0 : i32
    return %c0_i32, %arg1 : i32, i32
  }
  func.func @transform_4(%arg0: i32, %arg1: i32) -> (i32, i32) {
    %c0_i32 = arith.constant 0 : i32
    %c0_i32_0 = arith.constant 0 : i32
    return %c0_i32, %arg1 : i32, i32
  }
  func.func @transform_5(%arg0: i32, %arg1: i32) -> (i32, i32) {
    %c0_i32 = arith.constant 0 : i32
    return %arg0, %arg1 : i32, i32
  }
}

</mosaic_0001>

<llo_original>
// kernel: tpu_custom_call.1
$region0: #{tpu_custom_call.1}
  #allocation0 [shape = 'u32[]', space=smem, size = 0x4, offset = 0x4, fixed_abs, tag = 'smem constant byte address 0x4 - core index']
  #allocation1 [shape = 'u32[144,128]{1,0:T(1,128)}', space=vmem, size = 0x12000, scoped, tag = 'internal scratch']
  %s0 = inlined_call_operand.hbm [shape: bf16[16,32], index: 0, kind: input, shape index: {}]
  %s1 = inlined_call_operand.hbm [shape: bf16[32,256], index: 1, kind: input, shape index: {}]
  %s2 = inlined_call_operand.hbm [shape: bf16[32,16], index: 2, kind: input, shape index: {}]
  %s3 = inlined_call_operand.hbm [shape: bf16[16,256], index: 3, kind: input, shape index: {}]
  %s4 = inlined_call_operand.hbm [shape: f32[1,256], index: 4, kind: input, shape index: {}]
  %s5 = inlined_call_operand.hbm [shape: f32[16,256], index: 5, kind: output, shape index: {}]
  %s6 = sld [smem:[#allocation0]]
  $region50: #{tpu_custom_call.1} parent=0
    _
  %s8 = ssub.s32 1, %s6
  %s9 = scalar_select 0, %s8, %s6
  $region1: #{tpu_custom_call.1} parent=0
    #allocation2 [shape = 'u8[4096]{0}', space=vmem, size = 0x1000, scoped, tag = 'input window, operand 0, single buffered']
    #allocation3 [shape = 's32[1]{0}', space=sflag, size = 0x4, scoped, tag = 'scoped memory for tpu_custom_call.1']
    #allocation4 [shape = 's32[1]{0}', space=sflag, size = 0x4, scoped, tag = 'scoped memory for tpu_custom_call.1']
    #allocation5 [shape = 'u8[16384]{0}', space=vmem, size = 0x4000, scoped, tag = 'input window, operand 1, single buffered']
    #allocation6 [shape = 's32[1]{0}', space=sflag, size = 0x4, scoped, tag = 'scoped memory for tpu_custom_call.1']
    #allocation7 [shape = 'u8[8192]{0}', space=vmem, size = 0x2000, scoped, tag = 'input window, operand 2, single buffered']
    #allocation8 [shape = 'u8[8192]{0}', space=vmem, size = 0x2000, scoped, tag = 'input window, operand 3, single buffered']
    #allocation9 [shape = 's32[1]{0}', space=sflag, size = 0x4, scoped, tag = 'scoped memory for tpu_custom_call.1']
    #allocation10 [shape = 'u8[1024]{0}', space=vmem, size = 0x400, scoped, tag = 'input window, operand 4, single buffered']
    #allocation11 [shape = 'u8[16384]{0}', space=vmem, size = 0x4000, scoped, tag = 'output window, operand 0, single buffered']
    %10 = vsyncpa [#allocation3], 0
    %11 = vsyncpa [#allocation6], 0
    %12 = vsyncpa [#allocation9], 0
    %13 = vsyncpa [#allocation4], 0
    // Predicated region
    $region2: #{tpu_custom_call.1} parent=1 // pred_check
      _
    $region3: #{tpu_custom_call.1} parent=1 // pred_check_branch
      %15 = sbr.rel (0) target = $region5
    $region4: #{tpu_custom_call.1} parent=1 // pred_region
      %s17 = ssub.s32 128, 128
      %18 = vsyncadd [#allocation3], %s17
      %s19 = sshll.u32 [#allocation2], 4
      %s20 = int_to_ptr.vmem [resolvable:$true] %s19
      %25 = dma.hbm_to_vmem [thread:$0]  %s0, 128, %s20, [#allocation3], 64, 64, 4
    $region5: #{tpu_custom_call.1} parent=1 // pred_fallthru
      _
    // Predicated region
    $region6: #{tpu_custom_call.1} parent=1 // pred_check
      _
    $region7: #{tpu_custom_call.1} parent=1 // pred_check_branch
      %27 = sbr.rel (0) target = $region9
    $region8: #{tpu_custom_call.1} parent=1 // pred_region
      %s29 = ssub.s32 512, 512
      %30 = vsyncadd [#allocation6], %s29
      %s31 = sshll.u32 [#allocation5], 4
      %s32 = int_to_ptr.vmem [resolvable:$true] %s31
      %37 = dma.hbm_to_vmem [thread:$0]  %s1, 512, %s32, [#allocation6], 128, 128, 8
    $region9: #{tpu_custom_call.1} parent=1 // pred_fallthru
      _
    // Predicated region
    $region10: #{tpu_custom_call.1} parent=1 // pred_check
      _
    $region11: #{tpu_custom_call.1} parent=1 // pred_check_branch
      %39 = sbr.rel (0) target = $region13
    $region12: #{tpu_custom_call.1} parent=1 // pred_region
      %s41 = ssub.s32 256, 256
      %42 = vsyncadd [#allocation6], %s41
      %s43 = sshll.u32 [#allocation7], 4
      %s44 = int_to_ptr.vmem [resolvable:$true] %s43
      %49 = dma.hbm_to_vmem [thread:$0]  %s2, 256, %s44, [#allocation6], 64, 64, 4
    $region13: #{tpu_custom_call.1} parent=1 // pred_fallthru
      _
    // Predicated region
    $region14: #{tpu_custom_call.1} parent=1 // pred_check
      _
    $region15: #{tpu_custom_call.1} parent=1 // pred_check_branch
      %51 = sbr.rel (0) target = $region17
    $region16: #{tpu_custom_call.1} parent=1 // pred_region
      %s53 = ssub.s32 256, 256
      %54 = vsyncadd [#allocation9], %s53
      %s55 = sshll.u32 [#allocation8], 4
      %s56 = int_to_ptr.vmem [resolvable:$true] %s55
      %61 = dma.hbm_to_vmem [thread:$0]  %s3, 256, %s56, [#allocation9], 128, 128, 8
    $region17: #{tpu_custom_call.1} parent=1 // pred_fallthru
      _
    // Predicated region
    $region18: #{tpu_custom_call.1} parent=1 // pred_check
      _
    $region19: #{tpu_custom_call.1} parent=1 // pred_check_branch
      %63 = sbr.rel (0) target = $region21
    $region20: #{tpu_custom_call.1} parent=1 // pred_region
      %s65 = ssub.s32 32, 32
      %66 = vsyncadd [#allocation9], %s65
      %s68 = sshll.u32 [#allocation10], 4
      %s69 = int_to_ptr.vmem [resolvable:$true] %s68
      %71 = dma.hbm_to_vmem [thread:$0]  %s4, 32, %s69, [#allocation9]
    $region21: #{tpu_custom_call.1} parent=1 // pred_fallthru
      _
    // Predicated region
    $region22: #{tpu_custom_call.1} parent=1 // pred_check
      _
    $region23: #{tpu_custom_call.1} parent=1 // pred_check_branch
      %73 = sbr.rel (0) target = $region25
    $region24: #{tpu_custom_call.1} parent=1 // pred_region
      %74 = dma.done [#allocation3], 128
    $region25: #{tpu_custom_call.1} parent=1 // pred_fallthru
      _
    // Predicated region
    $region26: #{tpu_custom_call.1} parent=1 // pred_check
      _
    $region27: #{tpu_custom_call.1} parent=1 // pred_check_branch
      %76 = sbr.rel (0) target = $region29
    $region28: #{tpu_custom_call.1} parent=1 // pred_region
      %77 = dma.done [#allocation6], 512
    $region29: #{tpu_custom_call.1} parent=1 // pred_fallthru
      _
    // Predicated region
    $region30: #{tpu_custom_call.1} parent=1 // pred_check
      _
    $region31: #{tpu_custom_call.1} parent=1 // pred_check_branch
      %79 = sbr.rel (0) target = $region33
    $region32: #{tpu_custom_call.1} parent=1 // pred_region
      %80 = dma.done [#allocation6], 256
    $region33: #{tpu_custom_call.1} parent=1 // pred_fallthru
      _
    // Predicated region
    $region34: #{tpu_custom_call.1} parent=1 // pred_check
      _
    $region35: #{tpu_custom_call.1} parent=1 // pred_check_branch
      %82 = sbr.rel (0) target = $region37
    $region36: #{tpu_custom_call.1} parent=1 // pred_region
      %83 = dma.done [#allocation9], 256
    $region37: #{tpu_custom_call.1} parent=1 // pred_fallthru
      _
    // Predicated region
    $region38: #{tpu_custom_call.1} parent=1 // pred_check
      _
    $region39: #{tpu_custom_call.1} parent=1 // pred_check_branch
      %85 = sbr.rel (0) target = $region41
    $region40: #{tpu_custom_call.1} parent=1 // pred_region
      %86 = dma.done [#allocation9], 32
    $region41: #{tpu_custom_call.1} parent=1 // pred_fallthru
      _
    %v88 = vld [vmem:[#allocation2] sm:$0xf]
    %v89 = vld [vmem:[#allocation2 + $0x4] sm:$0xf]
    %v90 = vld [vmem:[#allocation5] sm:$0xff]
    %v91 = vld [vmem:[#allocation5 + $0x8] sm:$0xff]
    %v92 = vld [vmem:[#allocation5 + $0x10] sm:$0xff]
    %v93 = vld [vmem:[#allocation5 + $0x18] sm:$0xff]
    %v94 = vld [vmem:[#allocation7] sm:$0xf]
    %v95 = vld [vmem:[#allocation7 + $0x4] sm:$0xf]
    %v96 = vld [vmem:[#allocation7 + $0x8] sm:$0xf]
    %v97 = vld [vmem:[#allocation7 + $0xc] sm:$0xf]
    %v100 = vunpack.c.l.b16 %v88
    %v101 = vunpack.c.l.b16 %v89
    %v102 = vpack.c.b16 %v101, %v100
    %v107 = vunpack.c.l.b16 %v94
    %v108 = vunpack.c.l.b16 %v95
    %v109 = vunpack.c.l.b16 %v96
    %v110 = vunpack.c.l.b16 %v97
    %v111 = vpack.c.b16 %v108, %v107
    %v112 = vpack.c.b16 %v110, %v109
    %vm115 = vcmask 261120
    %v117 = vsel %vm115, %v102, 0
    %119 = vmatprep.subr.bf16.mxu0 0
    %120 = vmatpush1.bf16.msra.mxu0 %v111
    %121 = vmatprep.subr.bf16.mxu0 0
    %122 = vmatpush1.bf16.msra.mxu0 %v112
    %123 = vmatprep.subr.bf16.mxu0 0
    %124 = vmatpush1.bf16.msra.mxu0 0
    %125 = vmatprep.subr.bf16.mxu0 0
    %126 = vmatpush1.bf16.msra.mxu0 0
    %127 = vmatprep.subr.bf16.mxu0 0
    %128 = vmatpush1.bf16.msra.mxu0 0
    %129 = vmatprep.subr.bf16.mxu0 0
    %130 = vmatpush1.bf16.msra.mxu0 0
    %131 = vmatprep.subr.bf16.mxu0 0
    %132 = vmatpush1.bf16.msra.mxu0 0
    %133 = vmatprep.subr.bf16.mxu0 0
    %134 = vmatpush1.bf16.msra.mxu0 0
    %135 = vmatprep.subr.bf16.mxu0 0
    %136 = vmatpush1.bf16.msra.mxu0 0
    %137 = vmatprep.subr.bf16.mxu0 0
    %138 = vmatpush1.bf16.msra.mxu0 0
    %139 = vmatprep.subr.bf16.mxu0 0
    %140 = vmatpush1.bf16.msra.mxu0 0
    %141 = vmatprep.subr.bf16.mxu0 0
    %142 = vmatpush1.bf16.msra.mxu0 0
    %143 = vmatprep.subr.bf16.mxu0 0
    %144 = vmatpush1.bf16.msra.mxu0 0
    %145 = vmatprep.subr.bf16.mxu0 0
    %146 = vmatpush1.bf16.msra.mxu0 0
    %147 = vmatprep.subr.bf16.mxu0 0
    %148 = vmatpush1.bf16.msra.mxu0 0
    %149 = vmatprep.subr.bf16.mxu0 0
    %150 = vmatpush1.bf16.msra.mxu0 0
    %151 = vmatprep.mubr.bf16.mxu0 0
    %152 = vmatmul.mubr.bf16.gmra.mrb[0].mxu0 %v117
    %v153 = vpop.f32.mrb[0].mxu0
    %v154 = vadd.f32 0.0, %v153
    %v155 = vpop.f32.mrb[0].mxu0
    %v156 = vpop.f32.mrb[0].mxu0
    %v157 = vadd.f32 0.0, %v156
    %v158 = vpop.f32.mrb[0].mxu0
    %159 = vdwg.mxu0
    %v160 = vpack.c.bf16 %v157, %v154
    %v161 = vld [vmem:[#allocation8] sm:$0xff]
    %v162 = vld [vmem:[#allocation8 + $0x8] sm:$0xff]
    %v165 = vunpack.c.l.b16 %v161
    %v166 = vunpack.c.h.b16 %v161
    %v167 = vunpack.c.l.b16 %v162
    %v168 = vunpack.c.h.b16 %v162
    %v169 = vpack.c.b16 %v167, %v165
    %v170 = vpack.c.b16 %v168, %v166
    %vm173 = vcmask 130048
    %v175 = vsel %vm173, %v160, 0
    %177 = vmatprep.subr.bf16.mxu0 %v170
    %178 = vmatpush1.bf16.msra.mxu0 %v169
    %179 = vmatprep.subr.bf16.mxu0 0
    %180 = vmatpush1.bf16.msra.mxu0 0
    %181 = vmatprep.subr.bf16.mxu0 0
    %182 = vmatpush1.bf16.msra.mxu0 0
    %183 = vmatprep.subr.bf16.mxu0 0
    %184 = vmatpush1.bf16.msra.mxu0 0
    %185 = vmatprep.subr.bf16.mxu0 0
    %186 = vmatpush1.bf16.msra.mxu0 0
    %187 = vmatprep.subr.bf16.mxu0 0
    %188 = vmatpush1.bf16.msra.mxu0 0
    %189 = vmatprep.subr.bf16.mxu0 0
    %190 = vmatpush1.bf16.msra.mxu0 0
    %191 = vmatprep.subr.bf16.mxu0 0
    %192 = vmatpush1.bf16.msra.mxu0 0
    %193 = vmatprep.subr.bf16.mxu0 0
    %194 = vmatpush1.bf16.msra.mxu0 0
    %195 = vmatprep.subr.bf16.mxu0 0
    %196 = vmatpush1.bf16.msra.mxu0 0
    %197 = vmatprep.subr.bf16.mxu0 0
    %198 = vmatpush1.bf16.msra.mxu0 0
    %199 = vmatprep.subr.bf16.mxu0 0
    %200 = vmatpush1.bf16.msra.mxu0 0
    %201 = vmatprep.subr.bf16.mxu0 0
    %202 = vmatpush1.bf16.msra.mxu0 0
    %203 = vmatprep.subr.bf16.mxu0 0
    %204 = vmatpush1.bf16.msra.mxu0 0
    %205 = vmatprep.subr.bf16.mxu0 0
    %206 = vmatpush1.bf16.msra.mxu0 0
    %207 = vmatprep.subr.bf16.mxu0 0
    %208 = vmatpush1.bf16.msra.mxu0 0
    %209 = vmatprep.mubr.bf16.mxu0 0
    %210 = vmatmul.mubr.bf16.gmra.mrb[0].mxu0 %v175
    %v211 = vpop.f32.mrb[0].mxu0
    %v212 = vadd.f32 0.0, %v211
    %v213 = vpop.f32.mrb[0].mxu0
    %v214 = vadd.f32 0.0, %v213
    %v215 = vpop.f32.mrb[0].mxu0
    %v216 = vadd.f32 0.0, %v215
    %v217 = vpop.f32.mrb[0].mxu0
    %v218 = vadd.f32 0.0, %v217
    %219 = vdwg.mxu0
    %v224 = vunpack.c.l.b16 %v90
    %v225 = vunpack.c.h.b16 %v90
    %v226 = vunpack.c.l.b16 %v91
    %v227 = vunpack.c.h.b16 %v91
    %v228 = vunpack.c.l.b16 %v92
    %v229 = vunpack.c.h.b16 %v92
    %v230 = vunpack.c.l.b16 %v93
    %v231 = vunpack.c.h.b16 %v93
    %v232 = vpack.c.b16 %v226, %v224
    %v233 = vpack.c.b16 %v227, %v225
    %v234 = vpack.c.b16 %v230, %v228
    %v235 = vpack.c.b16 %v231, %v229
    %240 = vmatprep.subr.bf16.mxu0 %v233
    %241 = vmatpush1.bf16.msra.mxu0 %v232
    %242 = vmatprep.subr.bf16.mxu0 %v235
    %243 = vmatpush1.bf16.msra.mxu0 %v234
    %244 = vmatprep.subr.bf16.mxu0 0
    %245 = vmatpush1.bf16.msra.mxu0 0
    %246 = vmatprep.subr.bf16.mxu0 0
    %247 = vmatpush1.bf16.msra.mxu0 0
    %248 = vmatprep.subr.bf16.mxu0 0
    %249 = vmatpush1.bf16.msra.mxu0 0
    %250 = vmatprep.subr.bf16.mxu0 0
    %251 = vmatpush1.bf16.msra.mxu0 0
    %252 = vmatprep.subr.bf16.mxu0 0
    %253 = vmatpush1.bf16.msra.mxu0 0
    %254 = vmatprep.subr.bf16.mxu0 0
    %255 = vmatpush1.bf16.msra.mxu0 0
    %256 = vmatprep.subr.bf16.mxu0 0
    %257 = vmatpush1.bf16.msra.mxu0 0
    %258 = vmatprep.subr.bf16.mxu0 0
    %259 = vmatpush1.bf16.msra.mxu0 0
    %260 = vmatprep.subr.bf16.mxu0 0
    %261 = vmatpush1.bf16.msra.mxu0 0
    %262 = vmatprep.subr.bf16.mxu0 0
    %263 = vmatpush1.bf16.msra.mxu0 0
    %264 = vmatprep.subr.bf16.mxu0 0
    %265 = vmatpush1.bf16.msra.mxu0 0
    %266 = vmatprep.subr.bf16.mxu0 0
    %267 = vmatpush1.bf16.msra.mxu0 0
    %268 = vmatprep.subr.bf16.mxu0 0
    %269 = vmatpush1.bf16.msra.mxu0 0
    %270 = vmatprep.subr.bf16.mxu0 0
    %271 = vmatpush1.bf16.msra.mxu0 0
    %272 = vmatprep.mubr.bf16.mxu0 0
    %273 = vmatmul.mubr.bf16.gmra.mrb[0].mxu0 %v117
    %v274 = vpop.f32.mrb[0].mxu0
    %v275 = vadd.f32 %v212, %v274
    %v276 = vpop.f32.mrb[0].mxu0
    %v277 = vadd.f32 %v214, %v276
    %v278 = vpop.f32.mrb[0].mxu0
    %v279 = vadd.f32 %v216, %v278
    %v280 = vpop.f32.mrb[0].mxu0
    %v281 = vadd.f32 %v218, %v280
    %282 = vdwg.mxu0
    %v283 = vld [vmem:[#allocation10] sm:$0x3]
    %v285 = vlaneseq
    %v286 = vshrl.u32 %v285, 7
    %v287 = vsub.s32 0, %v286
    %v288 = vrot.slane %v283, %v287
    %v289 = vlaneseq
    %v290 = vshrl.u32 %v289, 7
    %v291 = vsub.s32 1, %v290
    %v292 = vrot.slane %v283, %v291
    %v295 = vadd.f32 %v275, %v288
    %v296 = vadd.f32 %v277, %v292
    %v297 = vadd.f32 %v279, %v288
    %v298 = vadd.f32 %v281, %v292
    %299 = vst [vmem:[#allocation11] sm:$0xff] %v295
    %300 = vst [vmem:[#allocation11 + $0x8] sm:$0xff] %v296
    %301 = vst [vmem:[#allocation11 + $0x10] sm:$0xff] %v297
    %302 = vst [vmem:[#allocation11 + $0x18] sm:$0xff] %v298
    // Predicated region
    $region42: #{tpu_custom_call.1} parent=1 // pred_check
      _
    $region43: #{tpu_custom_call.1} parent=1 // pred_check_branch
      %304 = sbr.rel (0) target = $region45
    $region44: #{tpu_custom_call.1} parent=1 // pred_region
      %s306 = ssub.s32 512, 512
      %307 = vsyncadd [#allocation4], %s306
      %s308 = sshll.u32 [#allocation11], 4
      %s309 = int_to_ptr.vmem [resolvable:$true] %s308
      %314 = dma.vmem_to_hbm [thread:$0]  %s309, 512, %s5, [#allocation4], 256, 256, 16
    $region45: #{tpu_custom_call.1} parent=1 // pred_fallthru
      _
    // Predicated region
    $region46: #{tpu_custom_call.1} parent=1 // pred_check
      _
    $region47: #{tpu_custom_call.1} parent=1 // pred_check_branch
      %316 = sbr.rel (0) target = $region49
    $region48: #{tpu_custom_call.1} parent=1 // pred_region
      %317 = dma.done [#allocation4], 512
    $region49: #{tpu_custom_call.1} parent=1 // pred_fallthru
      _
    %318 = vsyncpa [#allocation3], 1
    %319 = vsyncpa [#allocation6], 1
    %320 = vsyncpa [#allocation9], 1
    %321 = vsyncpa [#allocation4], 1

</llo_original>
